<compile_context>
chip_gen: v7x
topology: tpu7x:2x2x1
jax: 0.10.0
libtpu: 0.0.40
codegen_flags: <defaults>
</compile_context>

<pallas_src>
import functools

import jax
import jax.numpy as jnp
from jax.experimental import pallas as pl
from jax.experimental.pallas import tpu as pltpu


def _round_up(n, m):
    return ((n + m - 1) // m) * m


def _num_tensorcores_per_chip():
    """Best-effort query of TensorCores per chip (v7x: 2, v5e/v6e: 1)."""
    try:
        return max(1, int(getattr(jax.devices()[0], "num_cores", 1)))
    except Exception:
        return 1


def eqnet_kernel(x_ref, w1_ref, b1_ref, w2_ref, b2_ref, w3_ref, b3_ref, o_ref):
    # Cast the activation tile on-chip (VPU slack under the DMA shadow); the
    # wrapper never runs a separate HBM cast pass over x.
    x = x_ref[...].astype(w1_ref.dtype)
    # Layer 1 -- NOTE: the torch forward applies relu BEFORE adding the bias.
    h1 = jnp.maximum(
        jnp.dot(x, w1_ref[...], preferred_element_type=jnp.float32), 0.0
    ) + b1_ref[...]
    h1 = h1.astype(w2_ref.dtype)
    # Layer 2 (same relu-then-bias ordering).
    h2 = jnp.maximum(
        jnp.dot(h1, w2_ref[...], preferred_element_type=jnp.float32), 0.0
    ) + b2_ref[...]
    h2 = h2.astype(w3_ref.dtype)
    # Layer 3: plain linear (fc3.weight.T already folded into w3 outside).
    o_ref[...] = (
        jnp.dot(h2, w3_ref[...], preferred_element_type=jnp.float32) + b3_ref[...]
    )


def prepare_params(fc1_w, fc1_b, fc2_w, fc2_b, fc3_w, fc3_b,
                   eq_idx0, eq_idx1, network_dimensions, *, use_bf16=True):
    """One-time parameter plumbing, hoisted out of the per-call jitted forward.

    Builds the effective matmul weights exactly as the torch forward does:
    fc.weight.view(-1)[eq_indices].view(Din, Dout) and fc3.weight.T, plus
    (1, D) lane-dense bias rows, cast to the deployment dtypes once.
    """
    d0, d1, d2, d3 = network_dimensions
    mm_dtype = jnp.bfloat16 if use_bf16 else jnp.float32
    w1 = fc1_w.reshape(-1)[eq_idx0].reshape(d0, d1).astype(mm_dtype)
    w2 = fc2_w.reshape(-1)[eq_idx1].reshape(d1, d2).astype(mm_dtype)
    w3 = fc3_w.T.astype(mm_dtype)
    b1 = fc1_b.reshape(1, d1).astype(jnp.float32)
    b2 = fc2_b.reshape(1, d2).astype(jnp.float32)
    b3 = fc3_b.reshape(1, d3).astype(jnp.float32)
    return w1, b1, w2, b2, w3, b3


@functools.partial(jax.jit, static_argnames=("tile_b", "min_grid_steps"))
def eqnet_forward(x, w1, b1, w2, b2, w3, b3, *, tile_b=2048, min_grid_steps=1):
    B, d0 = x.shape
    d1 = w1.shape[1]
    d2 = w2.shape[1]
    d3 = w3.shape[1]

    # bf16 packs 2 rows per sublane -> align batch tiles to 16 rows; 8 for f32.
    row_align = 16 if w1.dtype == jnp.bfloat16 else 8

    # ---- batch-tile selection (all static, resolved at trace time) -----------
    tb = min(tile_b, _round_up(B, row_align))
    tb = max(row_align, _round_up(tb, row_align))
    # Generation-aware split: only force extra grid steps on multi-TC chips
    # (v7x), and give each core >= 2 steps so software pipelining still works.
    if min_grid_steps > 1 and B >= min_grid_steps * row_align:
        if pl.cdiv(B, tb) < min_grid_steps:
            tb = max(row_align, _round_up(pl.cdiv(B, min_grid_steps), row_align))
    num_tiles = pl.cdiv(B, tb)
    b_pad = num_tiles * tb

    # Zero-pad the batch once, in x's original dtype (no wrapper-side cast pass).
    if b_pad != B:
        x = jnp.pad(x, ((0, b_pad - B), (0, 0)))

    w_bytes = 2 if w1.dtype == jnp.bfloat16 else 4
    cost = pl.CostEstimate(
        flops=2 * b_pad * (d0 * d1 + d1 * d2 + d2 * d3),
        transcendentals=0,
        bytes_accessed=(
            b_pad * (d0 * x.dtype.itemsize + d3 * 4)
            + (d0 * d1 + d1 * d2 + d2 * d3) * w_bytes
            + (d1 + d2 + d3) * 4
        ),
    )

    out = pl.pallas_call(
        eqnet_kernel,
        out_shape=jax.ShapeDtypeStruct((b_pad, d3), jnp.float32),
        grid=(num_tiles,),
        in_specs=[
            pl.BlockSpec((tb, d0), lambda i: (i, 0)),   # x tile (per batch block)
            pl.BlockSpec((d0, d1), lambda i: (0, 0)),   # W1 (grid-resident)
            pl.BlockSpec((1, d1), lambda i: (0, 0)),    # b1
            pl.BlockSpec((d1, d2), lambda i: (0, 0)),   # W2
            pl.BlockSpec((1, d2), lambda i: (0, 0)),    # b2
            pl.BlockSpec((d2, d3), lambda i: (0, 0)),   # W3 (= fc3.weight.T)
            pl.BlockSpec((1, d3), lambda i: (0, 0)),    # b3
        ],
        out_specs=pl.BlockSpec((tb, d3), lambda i: (i, 0)),
        compiler_params=pltpu.CompilerParams(
            dimension_semantics=("parallel",),
        ),
        cost_estimate=cost,
    )(x, w1, b1, w2, b2, w3, b3)

    # Strip batch padding (no-op when the batch was already tile-aligned).
    return out[:B] if b_pad != B else out


def reference_forward(x, w1, b1, w2, b2, w3, b3):
    h1 = jnp.maximum(x @ w1, 0.0) + b1
    h2 = jnp.maximum(h1 @ w2, 0.0) + b2
    return h2 @ w3 + b3


def init_linear(key, in_features, out_features):
    """Deterministic nn.Linear-style init: weight (out,in), bias (out,)."""
    kw, kb = jax.random.split(key)
    bound = 1.0 / jnp.sqrt(jnp.float32(in_features))
    w = jax.random.uniform(
        kw, (out_features, in_features), jnp.float32, -bound, bound
    )
    b = jax.random.uniform(kb, (out_features,), jnp.float32, -bound, bound)
    return w, b


if __name__ == "__main__":
    # network_dimensions = [D0, D1, D2, D3]  (small shapes for this synthetic test)
    network_dimensions = (32, 64, 64, 16)
    d0, d1, d2, d3 = network_dimensions

    root = jax.random.PRNGKey(0)
    k_x, k_x2, k_x3, k_fc1, k_fc2, k_fc3, k_eq0, k_eq1 = jax.random.split(root, 8)

    # parameters (torch-layout weights: (out_features, in_features))
    fc1_w, fc1_b = init_linear(k_fc1, d0, d1)
    fc2_w, fc2_b = init_linear(k_fc2, d1, d2)
    fc3_w, fc3_b = init_linear(k_fc3, d2, d3)

    # eq_indices: deterministic permutations of the flattened weight tensors
    eq_idx0 = jax.random.permutation(k_eq0, d0 * d1)
    eq_idx1 = jax.random.permutation(k_eq1, d1 * d2)

    # >= 4 grid steps on v7x (2 per TensorCore); no forced split on v5e/v6e.
    n_tc = _num_tensorcores_per_chip()
    min_steps = 2 * n_tc if n_tc > 1 else 1

    # one-time parameter prep (hoisted out of the jitted forward)
    p32 = prepare_params(fc1_w, fc1_b, fc2_w, fc2_b, fc3_w, fc3_b,
                         eq_idx0, eq_idx1, network_dimensions, use_bf16=False)
    p16 = prepare_params(fc1_w, fc1_b, fc2_w, fc2_b, fc3_w, fc3_b,
                         eq_idx0, eq_idx1, network_dimensions, use_bf16=True)

    # ---- case 1: small batch, exact f32 matmul path ---------------------------
    batch = 8
    x = jax.random.normal(k_x, (batch, d0), jnp.float32)
    out = jax.block_until_ready(eqnet_forward(x, *p32, min_grid_steps=min_steps))
    ref = reference_forward(x, *p32)
    assert out.shape == (batch, d3)
    assert jnp.allclose(out, ref, atol=1e-5, rtol=1e-5), "f32 mismatch vs reference"

    # ---- case 2: non-multiple batch, default bf16 path -------------------------
    batch2 = 20
    x2 = jax.random.normal(k_x2, (batch2, d0), jnp.float32)
    out2 = jax.block_until_ready(eqnet_forward(x2, *p16, min_grid_steps=min_steps))
    ref2 = reference_forward(x2, *p32)
    assert out2.shape == (batch2, d3)
    assert jnp.allclose(out2, ref2, atol=2e-2, rtol=2e-2), "bf16 mismatch vs reference"

    # ---- case 3: forced small tile to exercise a multi-step pipelined grid -----
    batch3 = 40
    x3 = jax.random.normal(k_x3, (batch3, d0), jnp.float32)
    out3 = jax.block_until_ready(
        eqnet_forward(x3, *p16, tile_b=16, min_grid_steps=min_steps)
    )
    ref3 = reference_forward(x3, *p32)
    assert out3.shape == (batch3, d3)
    assert jnp.allclose(out3, ref3, atol=2e-2, rtol=2e-2), "multi-tile mismatch vs reference"

    print("KERNEL_OK")
</pallas_src>

<mosaic_0001>
module attributes {stable_mosaic.version = 11 : i64} {
  func.func @eqnet_kernel(%arg0: i32, %arg1: memref<8x32xf32, #tpu.memory_space<vmem>>, %arg2: memref<32x64xf32, #tpu.memory_space<vmem>>, %arg3: memref<1x64xf32, #tpu.memory_space<vmem>>, %arg4: memref<64x64xf32, #tpu.memory_space<vmem>>, %arg5: memref<1x64xf32, #tpu.memory_space<vmem>>, %arg6: memref<64x16xf32, #tpu.memory_space<vmem>>, %arg7: memref<1x16xf32, #tpu.memory_space<vmem>>, %arg8: memref<8x16xf32, #tpu.memory_space<vmem>>) attributes {dimension_semantics = [#tpu.dimension_semantics<parallel>], iteration_bounds = array<i64: 1>, scalar_prefetch = 0 : i64, scratch_operands = 0 : i64, tpu.core_type = #tpu.core_type<tc>, window_params = [{transform_indices = @transform_0, window_bounds = array<i64: 8, 32>}, {pipeline_mode = #tpu.pipeline_mode<synchronous>, transform_indices = @transform_1, window_bounds = array<i64: 32, 64>}, {pipeline_mode = #tpu.pipeline_mode<synchronous>, transform_indices = @transform_2, window_bounds = array<i64: 1, 64>}, {pipeline_mode = #tpu.pipeline_mode<synchronous>, transform_indices = @transform_3, window_bounds = array<i64: 64, 64>}, {pipeline_mode = #tpu.pipeline_mode<synchronous>, transform_indices = @transform_4, window_bounds = array<i64: 1, 64>}, {pipeline_mode = #tpu.pipeline_mode<synchronous>, transform_indices = @transform_5, window_bounds = array<i64: 64, 16>}, {pipeline_mode = #tpu.pipeline_mode<synchronous>, transform_indices = @transform_6, window_bounds = array<i64: 1, 16>}, {transform_indices = @transform_7, window_bounds = array<i64: 8, 16>}]} {
    %c0 = arith.constant 0 : index
    %c0_0 = arith.constant 0 : index
    %0 = vector.load %arg1[%c0, %c0_0] : memref<8x32xf32, #tpu.memory_space<vmem>>, vector<8x32xf32>
    %c0_1 = arith.constant 0 : index
    %c0_2 = arith.constant 0 : index
    %1 = vector.load %arg2[%c0_1, %c0_2] : memref<32x64xf32, #tpu.memory_space<vmem>>, vector<32x64xf32>
    %cst = arith.constant dense<0.000000e+00> : vector<8x64xf32>
    %2 = tpu.matmul %0, %1, %cst {dimension_numbers = #tpu.dot_dimension_numbers<[1], [0], [0], [1], [0, 0, 1, 1], [], []>} : vector<8x32xf32>, vector<32x64xf32>, vector<8x64xf32> -> vector<8x64xf32>
    %cst_3 = arith.constant 0.000000e+00 : f32
    %3 = vector.broadcast %cst_3 : f32 to vector<8x64xf32>
    %4 = arith.maximumf %2, %3 : vector<8x64xf32>
    %c0_4 = arith.constant 0 : index
    %c0_5 = arith.constant 0 : index
    %5 = vector.load %arg3[%c0_4, %c0_5] : memref<1x64xf32, #tpu.memory_space<vmem>>, vector<1x64xf32>
    %6 = vector.broadcast %5 : vector<1x64xf32> to vector<8x64xf32>
    %7 = arith.addf %4, %6 : vector<8x64xf32>
    %c0_6 = arith.constant 0 : index
    %c0_7 = arith.constant 0 : index
    %8 = vector.load %arg4[%c0_6, %c0_7] : memref<64x64xf32, #tpu.memory_space<vmem>>, vector<64x64xf32>
    %cst_8 = arith.constant dense<0.000000e+00> : vector<8x64xf32>
    %9 = tpu.matmul %7, %8, %cst_8 {dimension_numbers = #tpu.dot_dimension_numbers<[1], [0], [0], [1], [0, 0, 1, 1], [], []>} : vector<8x64xf32>, vector<64x64xf32>, vector<8x64xf32> -> vector<8x64xf32>
    %cst_9 = arith.constant 0.000000e+00 : f32
    %10 = vector.broadcast %cst_9 : f32 to vector<8x64xf32>
    %11 = arith.maximumf %9, %10 : vector<8x64xf32>
    %c0_10 = arith.constant 0 : index
    %c0_11 = arith.constant 0 : index
    %12 = vector.load %arg5[%c0_10, %c0_11] : memref<1x64xf32, #tpu.memory_space<vmem>>, vector<1x64xf32>
    %13 = vector.broadcast %12 : vector<1x64xf32> to vector<8x64xf32>
    %14 = arith.addf %11, %13 : vector<8x64xf32>
    %c0_12 = arith.constant 0 : index
    %c0_13 = arith.constant 0 : index
    %15 = vector.load %arg6[%c0_12, %c0_13] : memref<64x16xf32, #tpu.memory_space<vmem>>, vector<64x16xf32>
    %cst_14 = arith.constant dense<0.000000e+00> : vector<8x16xf32>
    %16 = tpu.matmul %14, %15, %cst_14 {dimension_numbers = #tpu.dot_dimension_numbers<[1], [0], [0], [1], [0, 0, 1, 1], [], []>} : vector<8x64xf32>, vector<64x16xf32>, vector<8x16xf32> -> vector<8x16xf32>
    %c0_15 = arith.constant 0 : index
    %c0_16 = arith.constant 0 : index
    %17 = vector.load %arg7[%c0_15, %c0_16] : memref<1x16xf32, #tpu.memory_space<vmem>>, vector<1x16xf32>
    %18 = vector.broadcast %17 : vector<1x16xf32> to vector<8x16xf32>
    %19 = arith.addf %16, %18 : vector<8x16xf32>
    %c0_17 = arith.constant 0 : index
    %c0_18 = arith.constant 0 : index
    %20 = vector.load %arg8[%c0_17, %c0_18] : memref<8x16xf32, #tpu.memory_space<vmem>>, vector<8x16xf32>
    tpu.vector_store %arg8[%c0_17, %c0_18], %19 {strides = array<i32>} : memref<8x16xf32, #tpu.memory_space<vmem>>, vector<8x16xf32>,
    return
  }
  func.func @transform_0(%arg0: i32) -> (i32, i32) {
    %c0_i32 = arith.constant 0 : i32
    %c0_i32_0 = arith.constant 0 : i32
    return %arg0, %c0_i32 : i32, i32
  }
  func.func @transform_1(%arg0: i32) -> (i32, i32) {
    %c0_i32 = arith.constant 0 : i32
    %c0_i32_0 = arith.constant 0 : i32
    %c0_i32_1 = arith.constant 0 : i32
    return %c0_i32, %c0_i32_0 : i32, i32
  }
  func.func @transform_2(%arg0: i32) -> (i32, i32) {
    %c0_i32 = arith.constant 0 : i32
    %c0_i32_0 = arith.constant 0 : i32
    %c0_i32_1 = arith.constant 0 : i32
    return %c0_i32, %c0_i32_0 : i32, i32
  }
  func.func @transform_3(%arg0: i32) -> (i32, i32) {
    %c0_i32 = arith.constant 0 : i32
    %c0_i32_0 = arith.constant 0 : i32
    %c0_i32_1 = arith.constant 0 : i32
    return %c0_i32, %c0_i32_0 : i32, i32
  }
  func.func @transform_4(%arg0: i32) -> (i32, i32) {
    %c0_i32 = arith.constant 0 : i32
    %c0_i32_0 = arith.constant 0 : i32
    %c0_i32_1 = arith.constant 0 : i32
    return %c0_i32, %c0_i32_0 : i32, i32
  }
  func.func @transform_5(%arg0: i32) -> (i32, i32) {
    %c0_i32 = arith.constant 0 : i32
    %c0_i32_0 = arith.constant 0 : i32
    %c0_i32_1 = arith.constant 0 : i32
    return %c0_i32, %c0_i32_0 : i32, i32
  }
  func.func @transform_6(%arg0: i32) -> (i32, i32) {
    %c0_i32 = arith.constant 0 : i32
    %c0_i32_0 = arith.constant 0 : i32
    %c0_i32_1 = arith.constant 0 : i32
    return %c0_i32, %c0_i32_0 : i32, i32
  }
  func.func @transform_7(%arg0: i32) -> (i32, i32) {
    %c0_i32 = arith.constant 0 : i32
    %c0_i32_0 = arith.constant 0 : i32
    return %arg0, %c0_i32 : i32, i32
  }
}

</mosaic_0001>

<llo_original>
// kernel: eqnet_forward.1
$region0: #{eqnet_forward.1}
  #allocation0 [shape = 'u32[]', space=smem, size = 0x4, offset = 0x4, fixed_abs, tag = 'smem constant byte address 0x4 - core index']
  #allocation1 [shape = 'u32[144,128]{1,0:T(1,128)}', space=vmem, size = 0x12000, scoped, tag = 'internal scratch']
  %s0 = inlined_call_operand.vmem [shape: f32[8,32], index: 0, kind: input, shape index: {}]
  %s1 = inlined_call_operand.hbm [shape: f32[32,64], index: 1, kind: input, shape index: {}]
  %s2 = inlined_call_operand.vmem [shape: f32[1,64], index: 2, kind: input, shape index: {}]
  %s3 = inlined_call_operand.vmem [shape: f32[64,64], index: 3, kind: input, shape index: {}]
  %s4 = inlined_call_operand.vmem [shape: f32[1,64], index: 4, kind: input, shape index: {}]
  %s5 = inlined_call_operand.vmem [shape: f32[64,16], index: 5, kind: input, shape index: {}]
  %s6 = inlined_call_operand.vmem [shape: f32[1,16], index: 6, kind: input, shape index: {}]
  %s7 = inlined_call_operand.hbm [shape: f32[8,16], index: 7, kind: output, shape index: {}]
  %s8 = sld [smem:[#allocation0]]
  $region42: #{eqnet_forward.1} parent=0
    _
  %s10 = ssub.s32 1, %s8
  %s11 = scalar_select 0, %s10, %s8
  $region1: #{eqnet_forward.1} parent=0
    #allocation2 [shape = 'u8[16384]{0}', space=vmem, size = 0x4000, scoped, tag = 'input window, operand 1, single buffered']
    #allocation3 [shape = 's32[1]{0}', space=sflag, size = 0x4, scoped, tag = 'scoped memory for eqnet_forward.1']
    #allocation4 [shape = 's32[1]{0}', space=sflag, size = 0x4, scoped, tag = 'scoped memory for eqnet_forward.1']
    #allocation5 [shape = 'u8[4096]{0}', space=vmem, size = 0x1000, scoped, tag = 'output window, operand 0, single buffered']
    %12 = vsyncpa [#allocation3], 0
    %13 = vsyncpa [#allocation4], 0
    // Predicated region
    $region2: #{eqnet_forward.1} parent=1 // pred_check
      _
    $region3: #{eqnet_forward.1} parent=1 // pred_check_branch
      %15 = sbr.rel (0) target = $region5
    $region4: #{eqnet_forward.1} parent=1 // pred_region
      _
    $region5: #{eqnet_forward.1} parent=1 // pred_fallthru
      _
    // Predicated region
    $region6: #{eqnet_forward.1} parent=1 // pred_check
      _
    $region7: #{eqnet_forward.1} parent=1 // pred_check_branch
      %17 = sbr.rel (0) target = $region9
    $region8: #{eqnet_forward.1} parent=1 // pred_region
      %s19 = ssub.s32 512, 512
      %20 = vsyncadd [#allocation3], %s19
      %s21 = sshll.u32 [#allocation2], 4
      %s22 = int_to_ptr.vmem [resolvable:$true] %s21
      %27 = dma.hbm_to_vmem [thread:$0]  %s1, 512, %s22, [#allocation3], 128, 128, 8
    $region9: #{eqnet_forward.1} parent=1 // pred_fallthru
      _
    // Predicated region
    $region10: #{eqnet_forward.1} parent=1 // pred_check
      _
    $region11: #{eqnet_forward.1} parent=1 // pred_check_branch
      %29 = sbr.rel (0) target = $region13
    $region12: #{eqnet_forward.1} parent=1 // pred_region
      _
    $region13: #{eqnet_forward.1} parent=1 // pred_fallthru
      _
    // Predicated region
    $region14: #{eqnet_forward.1} parent=1 // pred_check
      _
    $region15: #{eqnet_forward.1} parent=1 // pred_check_branch
      %31 = sbr.rel (0) target = $region17
    $region16: #{eqnet_forward.1} parent=1 // pred_region
      _
    $region17: #{eqnet_forward.1} parent=1 // pred_fallthru
      _
    // Predicated region
    $region18: #{eqnet_forward.1} parent=1 // pred_check
      _
    $region19: #{eqnet_forward.1} parent=1 // pred_check_branch
      %33 = sbr.rel (0) target = $region21
    $region20: #{eqnet_forward.1} parent=1 // pred_region
      _
    $region21: #{eqnet_forward.1} parent=1 // pred_fallthru
      _
    // Predicated region
    $region22: #{eqnet_forward.1} parent=1 // pred_check
      _
    $region23: #{eqnet_forward.1} parent=1 // pred_check_branch
      %35 = sbr.rel (0) target = $region25
    $region24: #{eqnet_forward.1} parent=1 // pred_region
      _
    $region25: #{eqnet_forward.1} parent=1 // pred_fallthru
      _
    // Predicated region
    $region26: #{eqnet_forward.1} parent=1 // pred_check
      _
    $region27: #{eqnet_forward.1} parent=1 // pred_check_branch
      %37 = sbr.rel (0) target = $region29
    $region28: #{eqnet_forward.1} parent=1 // pred_region
      _
    $region29: #{eqnet_forward.1} parent=1 // pred_fallthru
      _
    // Predicated region
    $region30: #{eqnet_forward.1} parent=1 // pred_check
      _
    $region31: #{eqnet_forward.1} parent=1 // pred_check_branch
      %39 = sbr.rel (0) target = $region33
    $region32: #{eqnet_forward.1} parent=1 // pred_region
      %40 = dma.done [#allocation3], 512
    $region33: #{eqnet_forward.1} parent=1 // pred_fallthru
      _
    %v41 = vld [vmem:[%s0] sm:$0xff]
    %v42 = vld [vmem:[#allocation2] sm:$0xff]
    %v43 = vld [vmem:[#allocation2 + $0x8] sm:$0xff]
    %v44 = vld [vmem:[#allocation2 + $0x10] sm:$0xff]
    %v45 = vld [vmem:[#allocation2 + $0x18] sm:$0xff]
    %vm46 = vcmask 261120
    %v48 = vsel %vm46, %v41, 0
    %50 = vmatprep.subr.mxu0 0.0
    %51 = vmatpush1.msra.mxu0 %v42
    %52 = vmatprep.subr.mxu0 0.0
    %53 = vmatpush1.msra.mxu0 %v43
    %54 = vmatprep.subr.mxu0 0.0
    %55 = vmatpush1.msra.mxu0 %v44
    %56 = vmatprep.subr.mxu0 0.0
    %57 = vmatpush1.msra.mxu0 %v45
    %58 = vmatprep.subr.mxu0 0.0
    %59 = vmatpush1.msra.mxu0 0.0
    %60 = vmatprep.subr.mxu0 0.0
    %61 = vmatpush1.msra.mxu0 0.0
    %62 = vmatprep.subr.mxu0 0.0
    %63 = vmatpush1.msra.mxu0 0.0
    %64 = vmatprep.subr.mxu0 0.0
    %65 = vmatpush1.msra.mxu0 0.0
    %66 = vmatprep.subr.mxu0 0.0
    %67 = vmatpush1.msra.mxu0 0.0
    %68 = vmatprep.subr.mxu0 0.0
    %69 = vmatpush1.msra.mxu0 0.0
    %70 = vmatprep.subr.mxu0 0.0
    %71 = vmatpush1.msra.mxu0 0.0
    %72 = vmatprep.subr.mxu0 0.0
    %73 = vmatpush1.msra.mxu0 0.0
    %74 = vmatprep.subr.mxu0 0.0
    %75 = vmatpush1.msra.mxu0 0.0
    %76 = vmatprep.subr.mxu0 0.0
    %77 = vmatpush1.msra.mxu0 0.0
    %78 = vmatprep.subr.mxu0 0.0
    %79 = vmatpush1.msra.mxu0 0.0
    %80 = vmatprep.subr.mxu0 0.0
    %81 = vmatpush1.msra.mxu0 0.0
    %82 = vmatprep.subr.mxu0 0.0
    %83 = vmatpush1.msra.mxu0 0.0
    %84 = vmatprep.subr.mxu0 0.0
    %85 = vmatpush1.msra.mxu0 0.0
    %86 = vmatprep.subr.mxu0 0.0
    %87 = vmatpush1.msra.mxu0 0.0
    %88 = vmatprep.subr.mxu0 0.0
    %89 = vmatpush1.msra.mxu0 0.0
    %90 = vmatprep.subr.mxu0 0.0
    %91 = vmatpush1.msra.mxu0 0.0
    %92 = vmatprep.subr.mxu0 0.0
    %93 = vmatpush1.msra.mxu0 0.0
    %94 = vmatprep.subr.mxu0 0.0
    %95 = vmatpush1.msra.mxu0 0.0
    %96 = vmatprep.subr.mxu0 0.0
    %97 = vmatpush1.msra.mxu0 0.0
    %98 = vmatprep.subr.mxu0 0.0
    %99 = vmatpush1.msra.mxu0 0.0
    %100 = vmatprep.subr.mxu0 0.0
    %101 = vmatpush1.msra.mxu0 0.0
    %102 = vmatprep.subr.mxu0 0.0
    %103 = vmatpush1.msra.mxu0 0.0
    %104 = vmatprep.subr.mxu0 0.0
    %105 = vmatpush1.msra.mxu0 0.0
    %106 = vmatprep.subr.mxu0 0.0
    %107 = vmatpush1.msra.mxu0 0.0
    %108 = vmatprep.subr.mxu0 0.0
    %109 = vmatpush1.msra.mxu0 0.0
    %110 = vmatprep.subr.mxu0 0.0
    %111 = vmatpush1.msra.mxu0 0.0
    %112 = vmatprep.subr.mxu0 0.0
    %113 = vmatpush1.msra.mxu0 0.0
    %114 = vmatprep.mubr.f32.mxu0 0.0
    %115 = vmatmul.mubr.f32.gmra.mrb[0].mxu0 %v48
    %v116 = vpop.f32.mrb[0].mxu0
    %v117 = vadd.f32 0.0, %v116
    %v118 = vpop.f32.mrb[0].mxu0
    %119 = vdwg.mxu0
    %v120 = vmax.f32 %v117, 0.0
    %v121 = vld [vmem:[%s2] sm:$0x1]
    %v123 = vlaneseq
    %v124 = vshrl.u32 %v123, 7
    %v125 = vsub.s32 0, %v124
    %v126 = vrot.slane %v121, %v125
    %v128 = vadd.f32 %v120, %v126
    %v129 = vld [vmem:[%s3] sm:$0xff]
    %v130 = vld [vmem:[%s3 + $0x8] sm:$0xff]
    %v131 = vld [vmem:[%s3 + $0x10] sm:$0xff]
    %v132 = vld [vmem:[%s3 + $0x18] sm:$0xff]
    %v133 = vld [vmem:[%s3 + $0x20] sm:$0xff]
    %v134 = vld [vmem:[%s3 + $0x28] sm:$0xff]
    %v135 = vld [vmem:[%s3 + $0x30] sm:$0xff]
    %v136 = vld [vmem:[%s3 + $0x38] sm:$0xff]
    %vm137 = vcmask 523264
    %v139 = vsel %vm137, %v128, 0
    %141 = vmatprep.subr.mxu0 0.0
    %142 = vmatpush1.msra.mxu0 %v129
    %143 = vmatprep.subr.mxu0 0.0
    %144 = vmatpush1.msra.mxu0 %v130
    %145 = vmatprep.subr.mxu0 0.0
    %146 = vmatpush1.msra.mxu0 %v131
    %147 = vmatprep.subr.mxu0 0.0
    %148 = vmatpush1.msra.mxu0 %v132
    %149 = vmatprep.subr.mxu0 0.0
    %150 = vmatpush1.msra.mxu0 %v133
    %151 = vmatprep.subr.mxu0 0.0
    %152 = vmatpush1.msra.mxu0 %v134
    %153 = vmatprep.subr.mxu0 0.0
    %154 = vmatpush1.msra.mxu0 %v135
    %155 = vmatprep.subr.mxu0 0.0
    %156 = vmatpush1.msra.mxu0 %v136
    %157 = vmatprep.subr.mxu0 0.0
    %158 = vmatpush1.msra.mxu0 0.0
    %159 = vmatprep.subr.mxu0 0.0
    %160 = vmatpush1.msra.mxu0 0.0
    %161 = vmatprep.subr.mxu0 0.0
    %162 = vmatpush1.msra.mxu0 0.0
    %163 = vmatprep.subr.mxu0 0.0
    %164 = vmatpush1.msra.mxu0 0.0
    %165 = vmatprep.subr.mxu0 0.0
    %166 = vmatpush1.msra.mxu0 0.0
    %167 = vmatprep.subr.mxu0 0.0
    %168 = vmatpush1.msra.mxu0 0.0
    %169 = vmatprep.subr.mxu0 0.0
    %170 = vmatpush1.msra.mxu0 0.0
    %171 = vmatprep.subr.mxu0 0.0
    %172 = vmatpush1.msra.mxu0 0.0
    %173 = vmatprep.subr.mxu0 0.0
    %174 = vmatpush1.msra.mxu0 0.0
    %175 = vmatprep.subr.mxu0 0.0
    %176 = vmatpush1.msra.mxu0 0.0
    %177 = vmatprep.subr.mxu0 0.0
    %178 = vmatpush1.msra.mxu0 0.0
    %179 = vmatprep.subr.mxu0 0.0
    %180 = vmatpush1.msra.mxu0 0.0
    %181 = vmatprep.subr.mxu0 0.0
    %182 = vmatpush1.msra.mxu0 0.0
    %183 = vmatprep.subr.mxu0 0.0
    %184 = vmatpush1.msra.mxu0 0.0
    %185 = vmatprep.subr.mxu0 0.0
    %186 = vmatpush1.msra.mxu0 0.0
    %187 = vmatprep.subr.mxu0 0.0
    %188 = vmatpush1.msra.mxu0 0.0
    %189 = vmatprep.subr.mxu0 0.0
    %190 = vmatpush1.msra.mxu0 0.0
    %191 = vmatprep.subr.mxu0 0.0
    %192 = vmatpush1.msra.mxu0 0.0
    %193 = vmatprep.subr.mxu0 0.0
    %194 = vmatpush1.msra.mxu0 0.0
    %195 = vmatprep.subr.mxu0 0.0
    %196 = vmatpush1.msra.mxu0 0.0
    %197 = vmatprep.subr.mxu0 0.0
    %198 = vmatpush1.msra.mxu0 0.0
    %199 = vmatprep.subr.mxu0 0.0
    %200 = vmatpush1.msra.mxu0 0.0
    %201 = vmatprep.subr.mxu0 0.0
    %202 = vmatpush1.msra.mxu0 0.0
    %203 = vmatprep.subr.mxu0 0.0
    %204 = vmatpush1.msra.mxu0 0.0
    %205 = vmatprep.mubr.f32.mxu0 0.0
    %206 = vmatmul.mubr.f32.gmra.mrb[0].mxu0 %v139
    %v207 = vpop.f32.mrb[0].mxu0
    %v208 = vadd.f32 0.0, %v207
    %v209 = vpop.f32.mrb[0].mxu0
    %210 = vdwg.mxu0
    %v211 = vmax.f32 %v208, 0.0
    %v212 = vld [vmem:[%s4] sm:$0x1]
    %v214 = vlaneseq
    %v215 = vshrl.u32 %v214, 7
    %v216 = vsub.s32 0, %v215
    %v217 = vrot.slane %v212, %v216
    %v219 = vadd.f32 %v211, %v217
    %v220 = vld [vmem:[%s5] sm:$0xff]
    %v221 = vld [vmem:[%s5 + $0x8] sm:$0xff]
    %v222 = vld [vmem:[%s5 + $0x10] sm:$0xff]
    %v223 = vld [vmem:[%s5 + $0x18] sm:$0xff]
    %v224 = vld [vmem:[%s5 + $0x20] sm:$0xff]
    %v225 = vld [vmem:[%s5 + $0x28] sm:$0xff]
    %v226 = vld [vmem:[%s5 + $0x30] sm:$0xff]
    %v227 = vld [vmem:[%s5 + $0x38] sm:$0xff]
    %v228 = vld [vmem:[%s6] sm:$0x1]
    %v230 = vlaneseq
    %v231 = vshrl.u32 %v230, 7
    %v232 = vsub.s32 0, %v231
    %v233 = vrot.slane %v228, %v232
    %v236 = vsel %vm137, %v219, 0
    %238 = vmatprep.subr.mxu0 0.0
    %239 = vmatpush1.msra.mxu0 %v220
    %240 = vmatprep.subr.mxu0 0.0
    %241 = vmatpush1.msra.mxu0 %v221
    %242 = vmatprep.subr.mxu0 0.0
    %243 = vmatpush1.msra.mxu0 %v222
    %244 = vmatprep.subr.mxu0 0.0
    %245 = vmatpush1.msra.mxu0 %v223
    %246 = vmatprep.subr.mxu0 0.0
    %247 = vmatpush1.msra.mxu0 %v224
    %248 = vmatprep.subr.mxu0 0.0
    %249 = vmatpush1.msra.mxu0 %v225
    %250 = vmatprep.subr.mxu0 0.0
    %251 = vmatpush1.msra.mxu0 %v226
    %252 = vmatprep.subr.mxu0 0.0
    %253 = vmatpush1.msra.mxu0 %v227
    %254 = vmatprep.subr.mxu0 0.0
    %255 = vmatpush1.msra.mxu0 0.0
    %256 = vmatprep.subr.mxu0 0.0
    %257 = vmatpush1.msra.mxu0 0.0
    %258 = vmatprep.subr.mxu0 0.0
    %259 = vmatpush1.msra.mxu0 0.0
    %260 = vmatprep.subr.mxu0 0.0
    %261 = vmatpush1.msra.mxu0 0.0
    %262 = vmatprep.subr.mxu0 0.0
    %263 = vmatpush1.msra.mxu0 0.0
    %264 = vmatprep.subr.mxu0 0.0
    %265 = vmatpush1.msra.mxu0 0.0
    %266 = vmatprep.subr.mxu0 0.0
    %267 = vmatpush1.msra.mxu0 0.0
    %268 = vmatprep.subr.mxu0 0.0
    %269 = vmatpush1.msra.mxu0 0.0
    %270 = vmatprep.subr.mxu0 0.0
    %271 = vmatpush1.msra.mxu0 0.0
    %272 = vmatprep.subr.mxu0 0.0
    %273 = vmatpush1.msra.mxu0 0.0
    %274 = vmatprep.subr.mxu0 0.0
    %275 = vmatpush1.msra.mxu0 0.0
    %276 = vmatprep.subr.mxu0 0.0
    %277 = vmatpush1.msra.mxu0 0.0
    %278 = vmatprep.subr.mxu0 0.0
    %279 = vmatpush1.msra.mxu0 0.0
    %280 = vmatprep.subr.mxu0 0.0
    %281 = vmatpush1.msra.mxu0 0.0
    %282 = vmatprep.subr.mxu0 0.0
    %283 = vmatpush1.msra.mxu0 0.0
    %284 = vmatprep.subr.mxu0 0.0
    %285 = vmatpush1.msra.mxu0 0.0
    %286 = vmatprep.subr.mxu0 0.0
    %287 = vmatpush1.msra.mxu0 0.0
    %288 = vmatprep.subr.mxu0 0.0
    %289 = vmatpush1.msra.mxu0 0.0
    %290 = vmatprep.subr.mxu0 0.0
    %291 = vmatpush1.msra.mxu0 0.0
    %292 = vmatprep.subr.mxu0 0.0
    %293 = vmatpush1.msra.mxu0 0.0
    %294 = vmatprep.subr.mxu0 0.0
    %295 = vmatpush1.msra.mxu0 0.0
    %296 = vmatprep.subr.mxu0 0.0
    %297 = vmatpush1.msra.mxu0 0.0
    %298 = vmatprep.subr.mxu0 0.0
    %299 = vmatpush1.msra.mxu0 0.0
    %300 = vmatprep.subr.mxu0 0.0
    %301 = vmatpush1.msra.mxu0 0.0
    %302 = vmatprep.mubr.f32.mxu0 0.0
    %303 = vmatmul.mubr.f32.gmra.mrb[0].mxu0 %v236
    %v304 = vpop.f32.mrb[0].mxu0
    %v305 = vadd.f32 %v233, %v304
    %v306 = vpop.f32.mrb[0].mxu0
    %307 = vdwg.mxu0
    %vm308 = vcmask 130048
    %309 = vst.msk [vmem:[#allocation5] sm:$0xff] %vm308, %v305
    // Predicated region
    $region34: #{eqnet_forward.1} parent=1 // pred_check
      _
    $region35: #{eqnet_forward.1} parent=1 // pred_check_branch
      %311 = sbr.rel (0) target = $region37
    $region36: #{eqnet_forward.1} parent=1 // pred_region
      %s313 = ssub.s32 128, 128
      %314 = vsyncadd [#allocation4], %s313
      %s316 = sshll.u32 [#allocation5], 4
      %s317 = int_to_ptr.vmem [resolvable:$true] %s316
      %319 = dma.vmem_to_hbm [thread:$0]  %s317, 128, %s7, [#allocation4]
    $region37: #{eqnet_forward.1} parent=1 // pred_fallthru
      _
    // Predicated region
    $region38: #{eqnet_forward.1} parent=1 // pred_check
      _
    $region39: #{eqnet_forward.1} parent=1 // pred_check_branch
      %321 = sbr.rel (0) target = $region41
    $region40: #{eqnet_forward.1} parent=1 // pred_region
      %322 = dma.done [#allocation4], 128
    $region41: #{eqnet_forward.1} parent=1 // pred_fallthru
      _
    %323 = vsyncpa [#allocation3], 1
    %324 = vsyncpa [#allocation4], 1

</llo_original>
